<compile_context>
chip_gen: v7x
topology: tpu7x:2x2x1
jax: 0.10.0
libtpu: 0.0.40
codegen_flags: <defaults>
</compile_context>

<pallas_src>
from functools import partial

import jax
import jax.numpy as jnp
from jax.experimental import pallas as pl
from jax.experimental.pallas import tpu as pltpu

_SQRT1_2 = 0.7071067811865476          # 1/sqrt(2)
_SQRT_2_OVER_PI = 0.7978845608028654   # sqrt(2/pi)
_GELU_TANH_C = 0.044715


def _gelu_exact_f32(x):
    # PyTorch nn.GELU() default: exact erf formulation, computed in f32.
    return 0.5 * x * (1.0 + jax.lax.erf(x * _SQRT1_2))


def _gelu_tanh(x):
    # tanh approximation; the transcendental lowers to the EUP slot and the
    # whole chain stays in x.dtype (bf16 on v6e/v7x).  Slight deviation vs erf.
    return 0.5 * x * (1.0 + jnp.tanh(_SQRT_2_OVER_PI * (x + _GELU_TANH_C * x * x * x)))


def _fused_adapt_mlp_kernel(x_ref, w1_ref, b1_ref, w2_ref, b2_ref, o_ref, *,
                            fast_gelu):
    # h   = GELU(x @ [w1 | wd] + [b1 | bd])            (f32 MXU accumulation)
    # out = h @ [w2 ; wu*scale] + (b2 + bu*scale)
    x = x_ref[...]
    h = jnp.dot(x, w1_ref[...], preferred_element_type=jnp.float32)
    if fast_gelu:
        # bias-add + GELU in the compute dtype; tanh goes to the EUP slot.
        ew = w2_ref.dtype
        h = h.astype(ew) + b1_ref[...].astype(ew)
        h = _gelu_tanh(h)
    else:
        # Exact erf GELU in f32 (matches PyTorch nn.GELU() semantics).
        h = h + b1_ref[...]
        h = _gelu_exact_f32(h).astype(w2_ref.dtype)
    out = jnp.dot(h, w2_ref[...], preferred_element_type=jnp.float32)
    out = out + b2_ref[...]
    o_ref[...] = out.astype(o_ref.dtype)


_SINGLE_BUFFER_SUPPORTED = None


def _probe_kernel(w_ref, o_ref):
    o_ref[...] = w_ref[...] + 1.0


def _single_buffer_weights_supported():
    """Probe once whether this JAX build accepts pl.Buffered(1) pipeline_mode.

    The tiny probe is the only place an exception is swallowed (by design);
    the real kernel call is never wrapped in a try/except.  On failure we fall
    back to default double-buffered weight blocks.
    """
    global _SINGLE_BUFFER_SUPPORTED
    if _SINGLE_BUFFER_SUPPORTED is None:
        try:
            f = pl.pallas_call(
                _probe_kernel,
                out_shape=jax.ShapeDtypeStruct((8, 128), jnp.float32),
                grid=(2,),
                in_specs=[pl.BlockSpec((8, 128), lambda i: (0, 0),
                                       pipeline_mode=pl.Buffered(1))],
                out_specs=pl.BlockSpec((8, 128), lambda i: (0, 0)),
            )
            jax.block_until_ready(f(jnp.zeros((8, 128), jnp.float32)))
            _SINGLE_BUFFER_SUPPORTED = True
        except Exception:
            _SINGLE_BUFFER_SUPPORTED = False
    return _SINGLE_BUFFER_SUPPORTED


def _default_vmem_limit_bytes():
    # v5e/v6e: 128 MiB physical VMEM (16/32 MiB default scoped limit) -> 96 MiB.
    # v7x: 64 MiB per TensorCore -> 48 MiB, leaving headroom.
    try:
        kind = jax.devices()[0].device_kind.lower()
    except Exception:
        kind = ""
    if "7" in kind:
        return 48 * 1024 * 1024
    return 96 * 1024 * 1024


def _build_call(n, d, hidden, tt, out_dtype, compute_itemsize, fast_gelu,
                single_buffer_weights, vmem_limit_bytes):
    if single_buffer_weights:
        # Grid-invariant blocks: double-buffering would only double VMEM use.
        def wspec(shape):
            return pl.BlockSpec(shape, lambda i: (0, 0),
                                pipeline_mode=pl.Buffered(1))
    else:
        def wspec(shape):
            return pl.BlockSpec(shape, lambda i: (0, 0))

    grid_spec = pltpu.PrefetchScalarGridSpec(
        num_scalar_prefetch=0,
        grid=(n // tt,),
        in_specs=[
            pl.BlockSpec((tt, d), lambda i: (i, 0)),   # x token tile (streamed)
            wspec((d, hidden)),                        # fused expand weights
            wspec((1, hidden)),                        # fused expand bias (f32)
            wspec((hidden, d)),                        # fused project weights
            wspec((1, d)),                             # fused project bias (f32)
        ],
        out_specs=pl.BlockSpec((tt, d), lambda i: (i, 0)),
    )
    cost = pl.CostEstimate(
        flops=int(4 * n * d * hidden),
        transcendentals=int(n * hidden),
        bytes_accessed=int(n * d * (compute_itemsize + jnp.dtype(out_dtype).itemsize)
                           + 2 * d * hidden * compute_itemsize
                           + 4 * (hidden + d)),
    )
    return pl.pallas_call(
        partial(_fused_adapt_mlp_kernel, fast_gelu=fast_gelu),
        out_shape=jax.ShapeDtypeStruct((n, d), out_dtype),
        grid_spec=grid_spec,
        compiler_params=pltpu.CompilerParams(
            dimension_semantics=("parallel",),
            vmem_limit_bytes=int(vmem_limit_bytes)),
        cost_estimate=cost,
    )


def fuse_adapter_mlp_params(params, *, adapter_scale=0.1,
                            compute_dtype=jnp.bfloat16):
    """Fold the adapter into the MLP weights ONCE per layer.

    Hoisted off the per-step hot path: in production call this once per
    encoder block and reuse the result (doing it per call re-materializes tens
    of MB of weight copies in HBM every step).

    params (PyTorch nn.Linear weights transposed to [in, out] layout):
      w1 [D, MLP]  b1 [1, MLP]   mlp.lin1
      w2 [MLP, D]  b2 [1, D]     mlp.lin2
      wd [D, BN]   bd [1, BN]    adapter_down
      wu [BN, D]   bu [1, D]     adapter_up
    """
    f32 = jnp.float32
    compute_dtype = jnp.dtype(compute_dtype)

    w1 = jnp.asarray(params["w1"], f32)
    b1 = jnp.asarray(params["b1"], f32).reshape(1, -1)
    w2 = jnp.asarray(params["w2"], f32)
    b2 = jnp.asarray(params["b2"], f32).reshape(1, -1)
    wd = jnp.asarray(params["wd"], f32)
    bd = jnp.asarray(params["bd"], f32).reshape(1, -1)
    wu = jnp.asarray(params["wu"], f32)
    bu = jnp.asarray(params["bu"], f32).reshape(1, -1)

    bn = wd.shape[1]
    bn_pad = (-bn) % 128                      # lane-align the adapter bottleneck
    if bn_pad:
        wd = jnp.pad(wd, ((0, 0), (0, bn_pad)))   # GELU(0)=0 and zero rows in the
        bd = jnp.pad(bd, ((0, 0), (0, bn_pad)))   # projection -> exact no-op pad
        wu = jnp.pad(wu, ((0, bn_pad), (0, 0)))

    scale = jnp.asarray(adapter_scale, f32)
    return {
        "w1cat": jnp.concatenate([w1, wd], axis=1).astype(compute_dtype),
        "b1cat": jnp.concatenate([b1, bd], axis=1),               # stays f32
        "w2cat": jnp.concatenate([w2, wu * scale], axis=0).astype(compute_dtype),
        "b2cat": b2 + bu * scale,                                 # stays f32
    }


def adapt_mlp_block_fused(x, fused, *, token_tile=512, fast_gelu=False,
                          vmem_limit_bytes=None):
    """Apply the fused MLP + adapter block to tokens x: [N, D].

    Eval-mode semantics (adapter dropout = identity).  Wrap in jax.jit in
    production.  token_tile 512-1024 recommended for ViT-scale N (clamped to N
    for small inputs); on v7x keep N // token_tile even so megacore sharding
    balances both TensorCores.
    """
    n, d = x.shape
    w1cat, b1cat = fused["w1cat"], fused["b1cat"]
    w2cat, b2cat = fused["w2cat"], fused["b2cat"]
    hidden = w1cat.shape[1]
    compute_dtype = w1cat.dtype

    tt = min(token_tile, n)
    if n % tt != 0:
        raise ValueError(f"N={n} must be divisible by token_tile={tt}")

    if vmem_limit_bytes is None:
        vmem_limit_bytes = _default_vmem_limit_bytes()

    call = _build_call(n, d, hidden, tt, x.dtype,
                       jnp.dtype(compute_dtype).itemsize, fast_gelu,
                       _single_buffer_weights_supported(), vmem_limit_bytes)
    return call(x.astype(compute_dtype), w1cat, b1cat, w2cat, b2cat)


def adapt_mlp_block(x, params, *, adapter_scale=0.1, token_tile=512,
                    compute_dtype=jnp.bfloat16, fast_gelu=False):
    """Convenience wrapper (fuses weights per call; prefer pre-fusing)."""
    fused = fuse_adapter_mlp_params(params, adapter_scale=adapter_scale,
                                    compute_dtype=compute_dtype)
    return adapt_mlp_block_fused(x, fused, token_tile=token_tile,
                                 fast_gelu=fast_gelu)


def _reference(x, p, scale):
    # Unfused f32 reference with the original module's op order
    # (eval-mode dropout = identity).
    x32 = x.astype(jnp.float32)
    h = _gelu_exact_f32(x32 @ p["w1"] + p["b1"])
    mlp_out = h @ p["w2"] + p["b2"]
    a = _gelu_exact_f32(x32 @ p["wd"] + p["bd"])
    adpt = a @ p["wu"] + p["bu"]
    return (mlp_out + adpt * scale).astype(x.dtype)


if __name__ == "__main__":
    # Small shapes consistent with the module: ViT-style tokens.
    B, H, W = 2, 8, 16         # batch, patch grid
    D = 32                     # embedding_dim
    MLP_DIM = 4 * D            # SAM MLPBlock hidden = 4 * dim
    BN = 64                    # adapter bottleneck (SAM_Adapter `bottleneck`)
    SCALE = 0.1                # adapter_scalar

    key = jax.random.PRNGKey(0)
    ks = jax.random.split(key, 8)

    # Deterministic synthetic parameters (shapes per the module __init__).
    # Note: reset_parameters() zero-inits adapter_up; small random values are
    # used instead so the adapter branch is numerically exercised.
    params = {
        "w1": jax.random.normal(ks[0], (D, MLP_DIM), jnp.float32) * 0.05,
        "b1": jax.random.normal(ks[1], (1, MLP_DIM), jnp.float32) * 0.01,
        "w2": jax.random.normal(ks[2], (MLP_DIM, D), jnp.float32) * 0.05,
        "b2": jax.random.normal(ks[3], (1, D), jnp.float32) * 0.01,
        "wd": jax.random.normal(ks[4], (D, BN), jnp.float32) * 0.05,   # adapter_down
        "bd": jnp.zeros((1, BN), jnp.float32),
        "wu": jax.random.normal(ks[5], (BN, D), jnp.float32) * 0.05,   # adapter_up
        "bu": jnp.zeros((1, D), jnp.float32),
    }

    # Tokens: [B, H, W, D] -> [N, D]
    x_bhwc = jax.random.normal(ks[6], (B, H, W, D), jnp.float32)
    x = x_bhwc.reshape(B * H * W, D)

    ref = _reference(x, params, SCALE)

    # 1) Production path: bf16 MXU matmuls (f32 accumulate), exact erf GELU,
    #    pre-fused weights (token_tile clamps 512 -> N=256 here).
    fused_bf16 = fuse_adapter_mlp_params(params, adapter_scale=SCALE,
                                         compute_dtype=jnp.bfloat16)
    out = jax.block_until_ready(adapt_mlp_block_fused(x, fused_bf16,
                                                      token_tile=512))
    assert out.shape == (B * H * W, D) and out.dtype == x.dtype
    assert jnp.allclose(out, ref, atol=2e-2, rtol=2e-2), "bf16 path mismatch"

    # 2) Exactness check: f32 matmuls reproduce the reference tightly.
    fused_f32 = fuse_adapter_mlp_params(params, adapter_scale=SCALE,
                                        compute_dtype=jnp.float32)
    out32 = jax.block_until_ready(adapt_mlp_block_fused(x, fused_f32,
                                                        token_tile=512))
    assert jnp.allclose(out32, ref, atol=1e-5, rtol=1e-5), "f32 path mismatch"

    # 3) Optional fast-GELU path (tanh approximation on the EUP), loose check.
    out_fast = jax.block_until_ready(
        adapt_mlp_block_fused(x, fused_f32, token_tile=512, fast_gelu=True))
    assert jnp.allclose(out_fast, ref, atol=2e-2, rtol=2e-2), "fast-GELU mismatch"

    print("KERNEL_OK")
</pallas_src>

<mosaic_0001>
module attributes {stable_mosaic.version = 11 : i64} {
  func.func @_probe_kernel(%arg0: i32, %arg1: memref<8x128xf32, #tpu.memory_space<vmem>>, %arg2: memref<8x128xf32, #tpu.memory_space<vmem>>) attributes {dimension_semantics = [#tpu.dimension_semantics<arbitrary>], iteration_bounds = array<i64: 2>, scalar_prefetch = 0 : i64, scratch_operands = 0 : i64, tpu.core_type = #tpu.core_type<tc>, window_params = [{pipeline_mode = #tpu.pipeline_mode<synchronous>, transform_indices = @transform_0, window_bounds = array<i64: 8, 128>}, {pipeline_mode = #tpu.pipeline_mode<synchronous>, transform_indices = @transform_1, window_bounds = array<i64: 8, 128>}]} {
    %c0 = arith.constant 0 : index
    %c0_0 = arith.constant 0 : index
    %0 = vector.load %arg1[%c0, %c0_0] : memref<8x128xf32, #tpu.memory_space<vmem>>, vector<8x128xf32>
    %cst = arith.constant 1.000000e+00 : f32
    %1 = vector.broadcast %cst : f32 to vector<8x128xf32>
    %2 = arith.addf %0, %1 : vector<8x128xf32>
    %c0_1 = arith.constant 0 : index
    %c0_2 = arith.constant 0 : index
    %3 = vector.load %arg2[%c0_1, %c0_2] : memref<8x128xf32, #tpu.memory_space<vmem>>, vector<8x128xf32>
    tpu.vector_store %arg2[%c0_1, %c0_2], %2 {strides = array<i32>} : memref<8x128xf32, #tpu.memory_space<vmem>>, vector<8x128xf32>,
    return
  }
  func.func @transform_0(%arg0: i32) -> (i32, i32) {
    %c0_i32 = arith.constant 0 : i32
    %c0_i32_0 = arith.constant 0 : i32
    %c0_i32_1 = arith.constant 0 : i32
    return %c0_i32, %c0_i32_0 : i32, i32
  }
  func.func @transform_1(%arg0: i32) -> (i32, i32) {
    %c0_i32 = arith.constant 0 : i32
    %c0_i32_0 = arith.constant 0 : i32
    %c0_i32_1 = arith.constant 0 : i32
    return %c0_i32, %c0_i32_0 : i32, i32
  }
}

module attributes {stable_mosaic.version = 11 : i64} {
  func.func @_fused_adapt_mlp_kernel(%arg0: i32, %arg1: memref<256x32xbf16, #tpu.memory_space<vmem>>, %arg2: memref<32x256xbf16, #tpu.memory_space<vmem>>, %arg3: memref<1x256xf32, #tpu.memory_space<vmem>>, %arg4: memref<256x32xbf16, #tpu.memory_space<vmem>>, %arg5: memref<1x32xf32, #tpu.memory_space<vmem>>, %arg6: memref<256x32xf32, #tpu.memory_space<vmem>>) attributes {dimension_semantics = [#tpu.dimension_semantics<parallel>], iteration_bounds = array<i64: 1>, scalar_prefetch = 0 : i64, scratch_operands = 0 : i64, tpu.core_type = #tpu.core_type<tc>, window_params = [{transform_indices = @transform_0, window_bounds = array<i64: 256, 32>}, {pipeline_mode = #tpu.pipeline_mode<synchronous>, transform_indices = @transform_1, window_bounds = array<i64: 32, 256>}, {pipeline_mode = #tpu.pipeline_mode<synchronous>, transform_indices = @transform_2, window_bounds = array<i64: 1, 256>}, {pipeline_mode = #tpu.pipeline_mode<synchronous>, transform_indices = @transform_3, window_bounds = array<i64: 256, 32>}, {pipeline_mode = #tpu.pipeline_mode<synchronous>, transform_indices = @transform_4, window_bounds = array<i64: 1, 32>}, {transform_indices = @transform_5, window_bounds = array<i64: 256, 32>}]} {
    %c0 = arith.constant 0 : index
    %c0_0 = arith.constant 0 : index
    %0 = vector.load %arg1[%c0, %c0_0] : memref<256x32xbf16, #tpu.memory_space<vmem>>, vector<256x32xbf16>
    %c0_1 = arith.constant 0 : index
    %c0_2 = arith.constant 0 : index
    %1 = vector.load %arg2[%c0_1, %c0_2] : memref<32x256xbf16, #tpu.memory_space<vmem>>, vector<32x256xbf16>
    %cst = arith.constant dense<0.000000e+00> : vector<256x256xf32>
    %2 = tpu.matmul %0, %1, %cst {dimension_numbers = #tpu.dot_dimension_numbers<[1], [0], [0], [1], [0, 0, 1, 1], [], []>} : vector<256x32xbf16>, vector<32x256xbf16>, vector<256x256xf32> -> vector<256x256xf32>
    %c0_3 = arith.constant 0 : index
    %c0_4 = arith.constant 0 : index
    %3 = vector.load %arg3[%c0_3, %c0_4] : memref<1x256xf32, #tpu.memory_space<vmem>>, vector<1x256xf32>
    %4 = vector.broadcast %3 : vector<1x256xf32> to vector<256x256xf32>
    %5 = arith.addf %2, %4 : vector<256x256xf32>
    %cst_5 = arith.constant 5.000000e-01 : f32
    %6 = vector.broadcast %cst_5 : f32 to vector<256x256xf32>
    %7 = arith.mulf %6, %5 : vector<256x256xf32>
    %cst_6 = arith.constant 0.707106769 : f32
    %8 = vector.broadcast %cst_6 : f32 to vector<256x256xf32>
    %9 = arith.mulf %5, %8 : vector<256x256xf32>
    %10 = math.erf %9 : vector<256x256xf32>
    %cst_7 = arith.constant 1.000000e+00 : f32
    %11 = vector.broadcast %cst_7 : f32 to vector<256x256xf32>
    %12 = arith.addf %11, %10 : vector<256x256xf32>
    %13 = arith.mulf %7, %12 : vector<256x256xf32>
    %14 = arith.truncf %13 : vector<256x256xf32> to vector<256x256xbf16>
    %c0_8 = arith.constant 0 : index
    %c0_9 = arith.constant 0 : index
    %15 = vector.load %arg4[%c0_8, %c0_9] : memref<256x32xbf16, #tpu.memory_space<vmem>>, vector<256x32xbf16>
    %cst_10 = arith.constant dense<0.000000e+00> : vector<256x32xf32>
    %16 = tpu.matmul %14, %15, %cst_10 {dimension_numbers = #tpu.dot_dimension_numbers<[1], [0], [0], [1], [0, 0, 1, 1], [], []>} : vector<256x256xbf16>, vector<256x32xbf16>, vector<256x32xf32> -> vector<256x32xf32>
    %c0_11 = arith.constant 0 : index
    %c0_12 = arith.constant 0 : index
    %17 = vector.load %arg5[%c0_11, %c0_12] : memref<1x32xf32, #tpu.memory_space<vmem>>, vector<1x32xf32>
    %18 = vector.broadcast %17 : vector<1x32xf32> to vector<256x32xf32>
    %19 = arith.addf %16, %18 : vector<256x32xf32>
    %c0_13 = arith.constant 0 : index
    %c0_14 = arith.constant 0 : index
    %20 = vector.load %arg6[%c0_13, %c0_14] : memref<256x32xf32, #tpu.memory_space<vmem>>, vector<256x32xf32>
    tpu.vector_store %arg6[%c0_13, %c0_14], %19 {strides = array<i32>} : memref<256x32xf32, #tpu.memory_space<vmem>>, vector<256x32xf32>,
    return
  }
  func.func @transform_0(%arg0: i32) -> (i32, i32) {
    %c0_i32 = arith.constant 0 : i32
    %c0_i32_0 = arith.constant 0 : i32
    return %arg0, %c0_i32 : i32, i32
  }
  func.func @transform_1(%arg0: i32) -> (i32, i32) {
    %c0_i32 = arith.constant 0 : i32
    %c0_i32_0 = arith.constant 0 : i32
    %c0_i32_1 = arith.constant 0 : i32
    return %c0_i32, %c0_i32_0 : i32, i32
  }
  func.func @transform_2(%arg0: i32) -> (i32, i32) {
    %c0_i32 = arith.constant 0 : i32
    %c0_i32_0 = arith.constant 0 : i32
    %c0_i32_1 = arith.constant 0 : i32
    return %c0_i32, %c0_i32_0 : i32, i32
  }
  func.func @transform_3(%arg0: i32) -> (i32, i32) {
    %c0_i32 = arith.constant 0 : i32
    %c0_i32_0 = arith.constant 0 : i32
    %c0_i32_1 = arith.constant 0 : i32
    return %c0_i32, %c0_i32_0 : i32, i32
  }
  func.func @transform_4(%arg0: i32) -> (i32, i32) {
    %c0_i32 = arith.constant 0 : i32
    %c0_i32_0 = arith.constant 0 : i32
    %c0_i32_1 = arith.constant 0 : i32
    return %c0_i32, %c0_i32_0 : i32, i32
  }
  func.func @transform_5(%arg0: i32) -> (i32, i32) {
    %c0_i32 = arith.constant 0 : i32
    %c0_i32_0 = arith.constant 0 : i32
    return %arg0, %c0_i32 : i32, i32
  }
}

</mosaic_0001>

<llo_original>
// kernel: tpu_custom_call.1
$region0: #{tpu_custom_call.1}
  #allocation0 [shape = 'u32[]', space=smem, size = 0x4, offset = 0x4, fixed_abs, tag = 'smem constant byte address 0x4 - core index']
  #allocation1 [shape = 'u32[144,128]{1,0:T(1,128)}', space=vmem, size = 0x12000, scoped, tag = 'internal scratch']
  %s0 = inlined_call_operand.hbm [shape: f32[8,128], index: 0, kind: input, shape index: {}]
  %s1 = inlined_call_operand.hbm [shape: f32[8,128], index: 1, kind: output, shape index: {}]
  %s2 = sld [smem:[#allocation0]]
  $region41: #{tpu_custom_call.1} parent=0
    _
  %s4 = ssub.s32 1, %s2
  %s5 = scalar_select 0, %s4, %s2
  $region1: #{tpu_custom_call.1} parent=0
    #allocation2 [shape = 'u8[4096]{0}', space=vmem, size = 0x1000, scoped, tag = 'input window, operand 0, single buffered']
    #allocation3 [shape = 's32[2]{0}', space=sflag, size = 0x8, scoped, tag = 'scoped memory for tpu_custom_call.1']
    #allocation4 [shape = 's32[2]{0}', space=sflag, size = 0x8, scoped, tag = 'scoped memory for tpu_custom_call.1']
    #allocation5 [shape = 'u8[4096]{0}', space=vmem, size = 0x1000, scoped, tag = 'output window, operand 0, single buffered']
    %6 = vsyncpa [#allocation3], 0
    %7 = vsyncpa [#allocation4], 0
    loop: start=0, step=1, limit=4
    $region2: #{tpu_custom_call.1} parent=1 // loop_pre_header
      _
    $region3: #{tpu_custom_call.1} parent=1 // loop_header
      %s9 = sphi 0, %s13
      %p10 = scmp.ge.s32.totalorder %s9, 4
      %s17 = sphi 0, %s17
      %s19 = sphi 0, %s17
      %s20 = sphi 0, %s19
      %s34 = sphi 0, %s20
      %s38 = sphi 0, %s38
      %s40 = sphi 0, %s38
      %s41 = sphi 0, %s40
      %s55 = sphi 0, %s41
    $region4: #{tpu_custom_call.1} parent=1 // loop_header_branch
      %12 = sbr.rel (%p10) target = $region8
    $region5: #{tpu_custom_call.1} parent=1 // loop_body
      %s14 = ssub.s32 %s9, 1
      %s15 = ssub.s32 %s9, 2
      %s16 = sadd.s32 %s9, 1
      %s18 = sadd.s32 %s17, 1
      %p21 = scmp.eq.s32.totalorder %s9, 1
      %p22 = scmp.ne.s32.totalorder %s17, %s19
      %p23 = scmp.eq.s32.totalorder %s9, 0
      %p24 = por %p22, %p23
      %p25 = scmp.ne.s32.totalorder %s17, %s19
      %p26 = scmp.eq.s32.totalorder %s14, 1
      %p27 = por %p25, %p26
      %p28 = scmp.ne.s32.totalorder %s19, %s20
      %p29 = scmp.eq.s32.totalorder %s14, 0
      %p30 = por %p28, %p29
      %p31 = scmp.ne.s32.totalorder %s19, %s20
      %p32 = scmp.eq.s32.totalorder %s15, 1
      %p33 = por %p31, %p32
      %p35 = scmp.ne.s32.totalorder %s20, %s34
      %p36 = scmp.eq.s32.totalorder %s15, 0
      %p37 = por %p35, %p36
      %s39 = sadd.s32 %s38, 1
      %p42 = scmp.eq.s32.totalorder %s9, 1
      %p43 = scmp.ne.s32.totalorder %s38, %s40
      %p44 = scmp.eq.s32.totalorder %s9, 0
      %p45 = por %p43, %p44
      %p46 = scmp.ne.s32.totalorder %s38, %s40
      %p47 = scmp.eq.s32.totalorder %s14, 1
      %p48 = por %p46, %p47
      %p49 = scmp.ne.s32.totalorder %s40, %s41
      %p50 = scmp.eq.s32.totalorder %s14, 0
      %p51 = por %p49, %p50
      %p52 = scmp.ne.s32.totalorder %s40, %s41
      %p53 = scmp.eq.s32.totalorder %s15, 1
      %p54 = por %p52, %p53
      %p56 = scmp.ne.s32.totalorder %s41, %s55
      %p57 = scmp.eq.s32.totalorder %s15, 0
      %p58 = por %p56, %p57
      %p59 = scmp.le.s32.totalorder 1, %s9
      %p60 = scmp.lt.s32.totalorder %s9, 3
      %p61 = pnand %p59, %p60
      %p62 = pneg %p61
      // Predicated region
      $region9: #{tpu_custom_call.1} parent=5 // pred_check
        _
      $region10: #{tpu_custom_call.1} parent=5 // pred_check_branch
        %64 = sbr.rel (%p61) target = $region12
      $region11: #{tpu_custom_call.1} parent=5 // pred_region
        %s65 = ssub.s32 %s9, 1
        // Predicated region
        $region13: #{tpu_custom_call.1} parent=11 // pred_check
          %p66 = pneg %p30
        $region14: #{tpu_custom_call.1} parent=11 // pred_check_branch
          %68 = sbr.rel (%p66) target = $region16
        $region15: #{tpu_custom_call.1} parent=11 // pred_region
          %s70 = ssub.s32 128, 128
          %71 = vsyncadd [#allocation3], %s70
          %s73 = sshll.u32 [#allocation2], 4
          %s74 = int_to_ptr.vmem [resolvable:$true] %s73
          %76 = dma.hbm_to_vmem [thread:$0]  %s0, 128, %s74, [#allocation3]
        $region16: #{tpu_custom_call.1} parent=11 // pred_fallthru
          _
      $region12: #{tpu_custom_call.1} parent=5 // pred_fallthru
        _
      %p77 = scmp.lt.s32.totalorder %s9, 2
      // Predicated region
      $region17: #{tpu_custom_call.1} parent=5 // pred_check
        %p78 = pneg %p77
      $region18: #{tpu_custom_call.1} parent=5 // pred_check_branch
        %80 = sbr.rel (%p78) target = $region20
      $region19: #{tpu_custom_call.1} parent=5 // pred_region
        _
      $region20: #{tpu_custom_call.1} parent=5 // pred_fallthru
        _
      %p81 = scmp.le.s32.totalorder 1, %s9
      %p82 = scmp.lt.s32.totalorder %s9, 3
      %p83 = pnand %p81, %p82
      %p84 = pneg %p83
      // Predicated region
      $region21: #{tpu_custom_call.1} parent=5 // pred_check
        _
      $region22: #{tpu_custom_call.1} parent=5 // pred_check_branch
        %86 = sbr.rel (%p83) target = $region24
      $region23: #{tpu_custom_call.1} parent=5 // pred_region
        %s87 = ssub.s32 %s9, 1
        // Predicated region
        $region25: #{tpu_custom_call.1} parent=23 // pred_check
          %p88 = pneg %p30
        $region26: #{tpu_custom_call.1} parent=23 // pred_check_branch
          %90 = sbr.rel (%p88) target = $region28
        $region27: #{tpu_custom_call.1} parent=23 // pred_region
          %91 = dma.done [#allocation3], 128
        $region28: #{tpu_custom_call.1} parent=23 // pred_fallthru
          _
        %p92 = pneg %p30
        %p93 = pneg %p27
        %p94 = pneg %p51
        %p95 = pneg %p48
        %v96 = vld [vmem:[#allocation2] sm:$0xff]
        %v97 = vadd.f32 %v96, 1.0
        %98 = vst [vmem:[#allocation5] sm:$0xff] %v97
        // Predicated region
        $region29: #{tpu_custom_call.1} parent=23 // pred_check
          %p99 = pneg %p48
        $region30: #{tpu_custom_call.1} parent=23 // pred_check_branch
          %101 = sbr.rel (%p99) target = $region32
        $region31: #{tpu_custom_call.1} parent=23 // pred_region
          %s103 = ssub.s32 128, 128
          %104 = vsyncadd [#allocation4], %s103
          %s106 = sshll.u32 [#allocation5], 4
          %s107 = int_to_ptr.vmem [resolvable:$true] %s106
          %109 = dma.vmem_to_hbm [thread:$0]  %s107, 128, %s1, [#allocation4]
        $region32: #{tpu_custom_call.1} parent=23 // pred_fallthru
          _
        // Predicated region
        $region33: #{tpu_custom_call.1} parent=23 // pred_check
          %p110 = pneg %p48
        $region34: #{tpu_custom_call.1} parent=23 // pred_check_branch
          %112 = sbr.rel (%p110) target = $region36
        $region35: #{tpu_custom_call.1} parent=23 // pred_region
          %113 = dma.done [#allocation4], 128
        $region36: #{tpu_custom_call.1} parent=23 // pred_fallthru
          _
      $region24: #{tpu_custom_call.1} parent=5 // pred_fallthru
        _
      %p114 = scmp.le.s32.totalorder 2, %s9
      // Predicated region
      $region37: #{tpu_custom_call.1} parent=5 // pred_check
        %p115 = pneg %p114
      $region38: #{tpu_custom_call.1} parent=5 // pred_check_branch
        %117 = sbr.rel (%p115) target = $region40
      $region39: #{tpu_custom_call.1} parent=5 // pred_region
        %s118 = ssub.s32 %s9, 2
      $region40: #{tpu_custom_call.1} parent=5 // pred_fallthru
        _
    $region6: #{tpu_custom_call.1} parent=1 // loop_footer
      %s13 = sadd.s32 1, %s9
    $region7: #{tpu_custom_call.1} parent=1 // loop_footer_branch
      %8 = sbr.rel target = $region3
    $region8: #{tpu_custom_call.1} parent=1 // loop_exit
      _
    %119 = vsyncpa [#allocation3], 1
    %s120 = scalar_lea.sflag [#allocation3], 1
    %121 = vsyncpa %s120, 1
    %122 = vsyncpa [#allocation4], 1
    %s123 = scalar_lea.sflag [#allocation4], 1
    %124 = vsyncpa %s123, 1

// kernel: tpu_custom_call.1
$region0: #{tpu_custom_call.1}
  #allocation0 [shape = 'u32[]', space=smem, size = 0x4, offset = 0x4, fixed_abs, tag = 'smem constant byte address 0x4 - core index']
  #allocation1 [shape = 'u32[144,128]{1,0:T(1,128)}', space=vmem, size = 0x12000, scoped, tag = 'internal scratch']
  %s0 = inlined_call_operand.hbm [shape: bf16[256,32], index: 0, kind: input, shape index: {}]
  %s1 = inlined_call_operand.hbm [shape: bf16[32,256], index: 1, kind: input, shape index: {}]
  %s2 = inlined_call_operand.hbm [shape: f32[1,256], index: 2, kind: input, shape index: {}]
  %s3 = inlined_call_operand.hbm [shape: bf16[256,32], index: 3, kind: input, shape index: {}]
  %s4 = inlined_call_operand.hbm [shape: f32[1,32], index: 4, kind: input, shape index: {}]
  %s5 = inlined_call_operand.hbm [shape: f32[256,32], index: 5, kind: output, shape index: {}]
  %s6 = sld [smem:[#allocation0]]
  $region50: #{tpu_custom_call.1} parent=0
    _
  %s8 = ssub.s32 1, %s6
  %s9 = scalar_select 0, %s8, %s6
  $region1: #{tpu_custom_call.1} parent=0
    #allocation2 [shape = 'u8[65536]{0}', space=vmem, size = 0x10000, scoped, tag = 'input window, operand 0, single buffered']
    #allocation3 [shape = 's32[1]{0}', space=sflag, size = 0x4, scoped, tag = 'scoped memory for tpu_custom_call.1']
    #allocation4 [shape = 's32[1]{0}', space=sflag, size = 0x4, scoped, tag = 'scoped memory for tpu_custom_call.1']
    #allocation5 [shape = 'u8[16384]{0}', space=vmem, size = 0x4000, scoped, tag = 'input window, operand 1, single buffered']
    #allocation6 [shape = 's32[1]{0}', space=sflag, size = 0x4, scoped, tag = 'scoped memory for tpu_custom_call.1']
    #allocation7 [shape = 'u8[1024]{0}', space=vmem, size = 0x400, scoped, tag = 'input window, operand 2, single buffered']
    #allocation8 [shape = 'u8[65536]{0}', space=vmem, size = 0x10000, scoped, tag = 'input window, operand 3, single buffered']
    #allocation9 [shape = 's32[1]{0}', space=sflag, size = 0x4, scoped, tag = 'scoped memory for tpu_custom_call.1']
    #allocation10 [shape = 'u8[512]{0}', space=vmem, size = 0x400, scoped, tag = 'input window, operand 4, single buffered']
    #allocation11 [shape = 'u8[131072]{0}', space=vmem, size = 0x20000, scoped, tag = 'output window, operand 0, single buffered']
    %10 = vsyncpa [#allocation3], 0
    %11 = vsyncpa [#allocation6], 0
    %12 = vsyncpa [#allocation9], 0
    %13 = vsyncpa [#allocation4], 0
    // Predicated region
    $region2: #{tpu_custom_call.1} parent=1 // pred_check
      _
    $region3: #{tpu_custom_call.1} parent=1 // pred_check_branch
      %15 = sbr.rel (0) target = $region5
    $region4: #{tpu_custom_call.1} parent=1 // pred_region
      %s17 = ssub.s32 2048, 2048
      %18 = vsyncadd [#allocation3], %s17
      %s19 = sshll.u32 [#allocation2], 4
      %s20 = int_to_ptr.vmem [resolvable:$true] %s19
      %25 = dma.hbm_to_vmem [thread:$0]  %s0, 2048, %s20, [#allocation3], 64, 64, 4
    $region5: #{tpu_custom_call.1} parent=1 // pred_fallthru
      _
    // Predicated region
    $region6: #{tpu_custom_call.1} parent=1 // pred_check
      _
    $region7: #{tpu_custom_call.1} parent=1 // pred_check_branch
      %27 = sbr.rel (0) target = $region9
    $region8: #{tpu_custom_call.1} parent=1 // pred_region
      %s29 = ssub.s32 512, 512
      %30 = vsyncadd [#allocation6], %s29
      %s31 = sshll.u32 [#allocation5], 4
      %s32 = int_to_ptr.vmem [resolvable:$true] %s31
      %37 = dma.hbm_to_vmem [thread:$0]  %s1, 512, %s32, [#allocation6], 128, 128, 8
    $region9: #{tpu_custom_call.1} parent=1 // pred_fallthru
      _
    // Predicated region
    $region10: #{tpu_custom_call.1} parent=1 // pred_check
      _
    $region11: #{tpu_custom_call.1} parent=1 // pred_check_branch
      %39 = sbr.rel (0) target = $region13
    $region12: #{tpu_custom_call.1} parent=1 // pred_region
      %s41 = ssub.s32 32, 32
      %42 = vsyncadd [#allocation6], %s41
      %s44 = sshll.u32 [#allocation7], 4
      %s45 = int_to_ptr.vmem [resolvable:$true] %s44
      %47 = dma.hbm_to_vmem [thread:$0]  %s2, 32, %s45, [#allocation6]
    $region13: #{tpu_custom_call.1} parent=1 // pred_fallthru
      _
    // Predicated region
    $region14: #{tpu_custom_call.1} parent=1 // pred_check
      _
    $region15: #{tpu_custom_call.1} parent=1 // pred_check_branch
      %49 = sbr.rel (0) target = $region17
    $region16: #{tpu_custom_call.1} parent=1 // pred_region
      %s51 = ssub.s32 2048, 2048
      %52 = vsyncadd [#allocation9], %s51
      %s53 = sshll.u32 [#allocation8], 4
      %s54 = int_to_ptr.vmem [resolvable:$true] %s53
      %59 = dma.hbm_to_vmem [thread:$0]  %s3, 2048, %s54, [#allocation9], 64, 64, 4
    $region17: #{tpu_custom_call.1} parent=1 // pred_fallthru
      _
    // Predicated region
    $region18: #{tpu_custom_call.1} parent=1 // pred_check
      _
    $region19: #{tpu_custom_call.1} parent=1 // pred_check_branch
      %61 = sbr.rel (0) target = $region21
    $region20: #{tpu_custom_call.1} parent=1 // pred_region
      %s63 = ssub.s32 16, 16
      %64 = vsyncadd [#allocation9], %s63
      %s66 = sshll.u32 [#allocation10], 4
      %s67 = int_to_ptr.vmem [resolvable:$true] %s66
      %69 = dma.hbm_to_vmem [thread:$0]  %s4, 16, %s67, [#allocation9]
    $region21: #{tpu_custom_call.1} parent=1 // pred_fallthru
      _
    // Predicated region
    $region22: #{tpu_custom_call.1} parent=1 // pred_check
      _
    $region23: #{tpu_custom_call.1} parent=1 // pred_check_branch
      %71 = sbr.rel (0) target = $region25
    $region24: #{tpu_custom_call.1} parent=1 // pred_region
      %72 = dma.done [#allocation3], 2048
    $region25: #{tpu_custom_call.1} parent=1 // pred_fallthru
      _
    // Predicated region
    $region26: #{tpu_custom_call.1} parent=1 // pred_check
      _
    $region27: #{tpu_custom_call.1} parent=1 // pred_check_branch
      %74 = sbr.rel (0) target = $region29
    $region28: #{tpu_custom_call.1} parent=1 // pred_region
      %75 = dma.done [#allocation6], 512
    $region29: #{tpu_custom_call.1} parent=1 // pred_fallthru
      _
    // Predicated region
    $region30: #{tpu_custom_call.1} parent=1 // pred_check
      _
    $region31: #{tpu_custom_call.1} parent=1 // pred_check_branch
      %77 = sbr.rel (0) target = $region33
    $region32: #{tpu_custom_call.1} parent=1 // pred_region
      %78 = dma.done [#allocation6], 32
    $region33: #{tpu_custom_call.1} parent=1 // pred_fallthru
      _
    // Predicated region
    $region34: #{tpu_custom_call.1} parent=1 // pred_check
      _
    $region35: #{tpu_custom_call.1} parent=1 // pred_check_branch
      %80 = sbr.rel (0) target = $region37
    $region36: #{tpu_custom_call.1} parent=1 // pred_region
      %81 = dma.done [#allocation9], 2048
    $region37: #{tpu_custom_call.1} parent=1 // pred_fallthru
      _
    // Predicated region
    $region38: #{tpu_custom_call.1} parent=1 // pred_check
      _
    $region39: #{tpu_custom_call.1} parent=1 // pred_check_branch
      %83 = sbr.rel (0) target = $region41
    $region40: #{tpu_custom_call.1} parent=1 // pred_region
      %84 = dma.done [#allocation9], 16
    $region41: #{tpu_custom_call.1} parent=1 // pred_fallthru
      _
    %v86 = vld [vmem:[#allocation2] sm:$0xf]
    %v87 = vld [vmem:[#allocation2 + $0x4] sm:$0xf]
    %v88 = vld [vmem:[#allocation2 + $0x8] sm:$0xf]
    %v89 = vld [vmem:[#allocation2 + $0xc] sm:$0xf]
    %v90 = vld [vmem:[#allocation2 + $0x10] sm:$0xf]
    %v91 = vld [vmem:[#allocation2 + $0x14] sm:$0xf]
    %v92 = vld [vmem:[#allocation2 + $0x18] sm:$0xf]
    %v93 = vld [vmem:[#allocation2 + $0x1c] sm:$0xf]
    %v94 = vld [vmem:[#allocation2 + $0x20] sm:$0xf]
    %v95 = vld [vmem:[#allocation2 + $0x24] sm:$0xf]
    %v96 = vld [vmem:[#allocation2 + $0x28] sm:$0xf]
    %v97 = vld [vmem:[#allocation2 + $0x2c] sm:$0xf]
    %v98 = vld [vmem:[#allocation2 + $0x30] sm:$0xf]
    %v99 = vld [vmem:[#allocation2 + $0x34] sm:$0xf]
    %v100 = vld [vmem:[#allocation2 + $0x38] sm:$0xf]
    %v101 = vld [vmem:[#allocation2 + $0x3c] sm:$0xf]
    %v102 = vld [vmem:[#allocation2 + $0x40] sm:$0xf]
    %v103 = vld [vmem:[#allocation2 + $0x44] sm:$0xf]
    %v104 = vld [vmem:[#allocation2 + $0x48] sm:$0xf]
    %v105 = vld [vmem:[#allocation2 + $0x4c] sm:$0xf]
    %v106 = vld [vmem:[#allocation2 + $0x50] sm:$0xf]
    %v107 = vld [vmem:[#allocation2 + $0x54] sm:$0xf]
    %v108 = vld [vmem:[#allocation2 + $0x58] sm:$0xf]
    %v109 = vld [vmem:[#allocation2 + $0x5c] sm:$0xf]
    %v110 = vld [vmem:[#allocation2 + $0x60] sm:$0xf]
    %v111 = vld [vmem:[#allocation2 + $0x64] sm:$0xf]
    %v112 = vld [vmem:[#allocation2 + $0x68] sm:$0xf]
    %v113 = vld [vmem:[#allocation2 + $0x6c] sm:$0xf]
    %v114 = vld [vmem:[#allocation2 + $0x70] sm:$0xf]
    %v115 = vld [vmem:[#allocation2 + $0x74] sm:$0xf]
    %v116 = vld [vmem:[#allocation2 + $0x78] sm:$0xf]
    %v117 = vld [vmem:[#allocation2 + $0x7c] sm:$0xf]
    %v118 = vld [vmem:[#allocation5] sm:$0xff]
    %v119 = vld [vmem:[#allocation5 + $0x8] sm:$0xff]
    %v120 = vld [vmem:[#allocation5 + $0x10] sm:$0xff]
    %v121 = vld [vmem:[#allocation5 + $0x18] sm:$0xff]
    %v122 = vld [vmem:[#allocation7] sm:$0x3]
    %v124 = vlaneseq
    %v125 = vshrl.u32 %v124, 7
    %v126 = vsub.s32 0, %v125
    %v127 = vrot.slane %v122, %v126
    %v128 = vlaneseq
    %v129 = vshrl.u32 %v128, 7
    %v130 = vsub.s32 1, %v129
    %v131 = vrot.slane %v122, %v130
    %v166 = vunpack.c.l.b16 %v86
    %v167 = vunpack.c.l.b16 %v87
    %v168 = vunpack.c.l.b16 %v88
    %v169 = vunpack.c.l.b16 %v89
    %v170 = vunpack.c.l.b16 %v90
    %v171 = vunpack.c.l.b16 %v91
    %v172 = vunpack.c.l.b16 %v92
    %v173 = vunpack.c.l.b16 %v93
    %v174 = vunpack.c.l.b16 %v94
    %v175 = vunpack.c.l.b16 %v95
    %v176 = vunpack.c.l.b16 %v96
    %v177 = vunpack.c.l.b16 %v97
    %v178 = vunpack.c.l.b16 %v98
    %v179 = vunpack.c.l.b16 %v99
    %v180 = vunpack.c.l.b16 %v100
    %v181 = vunpack.c.l.b16 %v101
    %v182 = vunpack.c.l.b16 %v102
    %v183 = vunpack.c.l.b16 %v103
    %v184 = vunpack.c.l.b16 %v104
    %v185 = vunpack.c.l.b16 %v105
    %v186 = vunpack.c.l.b16 %v106
    %v187 = vunpack.c.l.b16 %v107
    %v188 = vunpack.c.l.b16 %v108
    %v189 = vunpack.c.l.b16 %v109
    %v190 = vunpack.c.l.b16 %v110
    %v191 = vunpack.c.l.b16 %v111
    %v192 = vunpack.c.l.b16 %v112
    %v193 = vunpack.c.l.b16 %v113
    %v194 = vunpack.c.l.b16 %v114
    %v195 = vunpack.c.l.b16 %v115
    %v196 = vunpack.c.l.b16 %v116
    %v197 = vunpack.c.l.b16 %v117
    %v198 = vpack.c.b16 %v167, %v166
    %v199 = vpack.c.b16 %v169, %v168
    %v200 = vpack.c.b16 %v171, %v170
    %v201 = vpack.c.b16 %v173, %v172
    %v202 = vpack.c.b16 %v175, %v174
    %v203 = vpack.c.b16 %v177, %v176
    %v204 = vpack.c.b16 %v179, %v178
    %v205 = vpack.c.b16 %v181, %v180
    %v206 = vpack.c.b16 %v183, %v182
    %v207 = vpack.c.b16 %v185, %v184
    %v208 = vpack.c.b16 %v187, %v186
    %v209 = vpack.c.b16 %v189, %v188
    %v210 = vpack.c.b16 %v191, %v190
    %v211 = vpack.c.b16 %v193, %v192
    %v212 = vpack.c.b16 %v195, %v194
    %v213 = vpack.c.b16 %v197, %v196
    %v218 = vunpack.c.l.b16 %v118
    %v219 = vunpack.c.h.b16 %v118
    %v220 = vunpack.c.l.b16 %v119
    %v221 = vunpack.c.h.b16 %v119
    %v222 = vunpack.c.l.b16 %v120
    %v223 = vunpack.c.h.b16 %v120
    %v224 = vunpack.c.l.b16 %v121
    %v225 = vunpack.c.h.b16 %v121
    %v226 = vpack.c.b16 %v220, %v218
    %v227 = vpack.c.b16 %v221, %v219
    %v228 = vpack.c.b16 %v224, %v222
    %v229 = vpack.c.b16 %v225, %v223
    %vm234 = vcmask 261120
    %v236 = vsel %vm234, %v198, 0
    %v239 = vsel %vm234, %v199, 0
    %v242 = vsel %vm234, %v200, 0
    %v245 = vsel %vm234, %v201, 0
    %v248 = vsel %vm234, %v202, 0
    %v251 = vsel %vm234, %v203, 0
    %v254 = vsel %vm234, %v204, 0
    %v257 = vsel %vm234, %v205, 0
    %v260 = vsel %vm234, %v206, 0
    %v263 = vsel %vm234, %v207, 0
    %v266 = vsel %vm234, %v208, 0
    %v269 = vsel %vm234, %v209, 0
    %v272 = vsel %vm234, %v210, 0
    %v275 = vsel %vm234, %v211, 0
    %v278 = vsel %vm234, %v212, 0
    %v281 = vsel %vm234, %v213, 0
    %283 = vmatprep.subr.bf16.mxu0 %v227
    %284 = vmatpush1.bf16.msra.mxu0 %v226
    %285 = vmatprep.subr.bf16.mxu0 %v229
    %286 = vmatpush1.bf16.msra.mxu0 %v228
    %287 = vmatprep.subr.bf16.mxu0 0
    %288 = vmatpush1.bf16.msra.mxu0 0
    %289 = vmatprep.subr.bf16.mxu0 0
    %290 = vmatpush1.bf16.msra.mxu0 0
    %291 = vmatprep.subr.bf16.mxu0 0
    %292 = vmatpush1.bf16.msra.mxu0 0
    %293 = vmatprep.subr.bf16.mxu0 0
    %294 = vmatpush1.bf16.msra.mxu0 0
    %295 = vmatprep.subr.bf16.mxu0 0
    %296 = vmatpush1.bf16.msra.mxu0 0
    %297 = vmatprep.subr.bf16.mxu0 0
    %298 = vmatpush1.bf16.msra.mxu0 0
    %299 = vmatprep.subr.bf16.mxu0 0
    %300 = vmatpush1.bf16.msra.mxu0 0
    %301 = vmatprep.subr.bf16.mxu0 0
    %302 = vmatpush1.bf16.msra.mxu0 0
    %303 = vmatprep.subr.bf16.mxu0 0
    %304 = vmatpush1.bf16.msra.mxu0 0
    %305 = vmatprep.subr.bf16.mxu0 0
    %306 = vmatpush1.bf16.msra.mxu0 0
    %307 = vmatprep.subr.bf16.mxu0 0
    %308 = vmatpush1.bf16.msra.mxu0 0
    %309 = vmatprep.subr.bf16.mxu0 0
    %310 = vmatpush1.bf16.msra.mxu0 0
    %311 = vmatprep.subr.bf16.mxu0 0
    %312 = vmatpush1.bf16.msra.mxu0 0
    %313 = vmatprep.subr.bf16.mxu0 0
    %314 = vmatpush1.bf16.msra.mxu0 0
    %315 = vmatprep.mubr.bf16.mxu0 0
    %316 = vmatmul.mubr.bf16.gmra.mrb[0].mxu0 %v236
    %v317 = vpop.f32.mrb[0].mxu0
    %v318 = vadd.f32 %v127, %v317
    %v319 = vpop.f32.mrb[0].mxu0
    %v320 = vadd.f32 %v131, %v319
    %v321 = vpop.f32.mrb[0].mxu0
    %v322 = vadd.f32 %v127, %v321
    %v323 = vpop.f32.mrb[0].mxu0
    %v324 = vadd.f32 %v131, %v323
    %325 = vmatprep.mubr.bf16.mxu0 0
    %326 = vmatmul.mubr.bf16.gmra.mrb[0].mxu0 %v239
    %v327 = vpop.f32.mrb[0].mxu0
    %v328 = vadd.f32 %v127, %v327
    %v329 = vpop.f32.mrb[0].mxu0
    %v330 = vadd.f32 %v131, %v329
    %v331 = vpop.f32.mrb[0].mxu0
    %v332 = vadd.f32 %v127, %v331
    %v333 = vpop.f32.mrb[0].mxu0
    %v334 = vadd.f32 %v131, %v333
    %335 = vmatprep.mubr.bf16.mxu0 0
    %336 = vmatmul.mubr.bf16.gmra.mrb[0].mxu0 %v242
    %v337 = vpop.f32.mrb[0].mxu0
    %v338 = vadd.f32 %v127, %v337
    %v339 = vpop.f32.mrb[0].mxu0
    %v340 = vadd.f32 %v131, %v339
    %v341 = vpop.f32.mrb[0].mxu0
    %v342 = vadd.f32 %v127, %v341
    %v343 = vpop.f32.mrb[0].mxu0
    %v344 = vadd.f32 %v131, %v343
    %345 = vmatprep.mubr.bf16.mxu0 0
    %346 = vmatmul.mubr.bf16.gmra.mrb[0].mxu0 %v245
    %v347 = vpop.f32.mrb[0].mxu0
    %v348 = vadd.f32 %v127, %v347
    %v349 = vpop.f32.mrb[0].mxu0
    %v350 = vadd.f32 %v131, %v349
    %v351 = vpop.f32.mrb[0].mxu0
    %v352 = vadd.f32 %v127, %v351
    %v353 = vpop.f32.mrb[0].mxu0
    %v354 = vadd.f32 %v131, %v353
    %355 = vmatprep.mubr.bf16.mxu0 0
    %356 = vmatmul.mubr.bf16.gmra.mrb[0].mxu0 %v248
    %v357 = vpop.f32.mrb[0].mxu0
    %v358 = vadd.f32 %v127, %v357
    %v359 = vpop.f32.mrb[0].mxu0
    %v360 = vadd.f32 %v131, %v359
    %v361 = vpop.f32.mrb[0].mxu0
    %v362 = vadd.f32 %v127, %v361
    %v363 = vpop.f32.mrb[0].mxu0
    %v364 = vadd.f32 %v131, %v363
    %365 = vmatprep.mubr.bf16.mxu0 0
    %366 = vmatmul.mubr.bf16.gmra.mrb[0].mxu0 %v251
    %v367 = vpop.f32.mrb[0].mxu0
    %v368 = vadd.f32 %v127, %v367
    %v369 = vpop.f32.mrb[0].mxu0
    %v370 = vadd.f32 %v131, %v369
    %v371 = vpop.f32.mrb[0].mxu0
    %v372 = vadd.f32 %v127, %v371
    %v373 = vpop.f32.mrb[0].mxu0
    %v374 = vadd.f32 %v131, %v373
    %375 = vmatprep.mubr.bf16.mxu0 0
    %376 = vmatmul.mubr.bf16.gmra.mrb[0].mxu0 %v254
    %v377 = vpop.f32.mrb[0].mxu0
    %v378 = vadd.f32 %v127, %v377
    %v379 = vpop.f32.mrb[0].mxu0
    %v380 = vadd.f32 %v131, %v379
    %v381 = vpop.f32.mrb[0].mxu0
    %v382 = vadd.f32 %v127, %v381
    %v383 = vpop.f32.mrb[0].mxu0
    %v384 = vadd.f32 %v131, %v383
    %385 = vmatprep.mubr.bf16.mxu0 0
    %386 = vmatmul.mubr.bf16.gmra.mrb[0].mxu0 %v257
    %v387 = vpop.f32.mrb[0].mxu0
    %v388 = vadd.f32 %v127, %v387
    %v389 = vpop.f32.mrb[0].mxu0
    %v390 = vadd.f32 %v131, %v389
    %v391 = vpop.f32.mrb[0].mxu0
    %v392 = vadd.f32 %v127, %v391
    %v393 = vpop.f32.mrb[0].mxu0
    %v394 = vadd.f32 %v131, %v393
    %395 = vmatprep.mubr.bf16.mxu0 0
    %396 = vmatmul.mubr.bf16.gmra.mrb[0].mxu0 %v260
    %v397 = vpop.f32.mrb[0].mxu0
    %v398 = vadd.f32 %v127, %v397
    %v399 = vpop.f32.mrb[0].mxu0
    %v400 = vadd.f32 %v131, %v399
    %v401 = vpop.f32.mrb[0].mxu0
    %v402 = vadd.f32 %v127, %v401
    %v403 = vpop.f32.mrb[0].mxu0
    %v404 = vadd.f32 %v131, %v403
    %405 = vmatprep.mubr.bf16.mxu0 0
    %406 = vmatmul.mubr.bf16.gmra.mrb[0].mxu0 %v263
    %v407 = vpop.f32.mrb[0].mxu0
    %v408 = vadd.f32 %v127, %v407
    %v409 = vpop.f32.mrb[0].mxu0
    %v410 = vadd.f32 %v131, %v409
    %v411 = vpop.f32.mrb[0].mxu0
    %v412 = vadd.f32 %v127, %v411
    %v413 = vpop.f32.mrb[0].mxu0
    %v414 = vadd.f32 %v131, %v413
    %415 = vmatprep.mubr.bf16.mxu0 0
    %416 = vmatmul.mubr.bf16.gmra.mrb[0].mxu0 %v266
    %v417 = vpop.f32.mrb[0].mxu0
    %v418 = vadd.f32 %v127, %v417
    %v419 = vpop.f32.mrb[0].mxu0
    %v420 = vadd.f32 %v131, %v419
    %v421 = vpop.f32.mrb[0].mxu0
    %v422 = vadd.f32 %v127, %v421
    %v423 = vpop.f32.mrb[0].mxu0
    %v424 = vadd.f32 %v131, %v423
    %425 = vmatprep.mubr.bf16.mxu0 0
    %426 = vmatmul.mubr.bf16.gmra.mrb[0].mxu0 %v269
    %v427 = vpop.f32.mrb[0].mxu0
    %v428 = vadd.f32 %v127, %v427
    %v429 = vpop.f32.mrb[0].mxu0
    %v430 = vadd.f32 %v131, %v429
    %v431 = vpop.f32.mrb[0].mxu0
    %v432 = vadd.f32 %v127, %v431
    %v433 = vpop.f32.mrb[0].mxu0
    %v434 = vadd.f32 %v131, %v433
    %435 = vmatprep.mubr.bf16.mxu0 0
    %436 = vmatmul.mubr.bf16.gmra.mrb[0].mxu0 %v272
    %v437 = vpop.f32.mrb[0].mxu0
    %v438 = vadd.f32 %v127, %v437
    %v439 = vpop.f32.mrb[0].mxu0
    %v440 = vadd.f32 %v131, %v439
    %v441 = vpop.f32.mrb[0].mxu0
    %v442 = vadd.f32 %v127, %v441
    %v443 = vpop.f32.mrb[0].mxu0
    %v444 = vadd.f32 %v131, %v443
    %445 = vmatprep.mubr.bf16.mxu0 0
    %446 = vmatmul.mubr.bf16.gmra.mrb[0].mxu0 %v275
    %v447 = vpop.f32.mrb[0].mxu0
    %v448 = vadd.f32 %v127, %v447
    %v449 = vpop.f32.mrb[0].mxu0
    %v450 = vadd.f32 %v131, %v449
    %v451 = vpop.f32.mrb[0].mxu0
    %v452 = vadd.f32 %v127, %v451
    %v453 = vpop.f32.mrb[0].mxu0
    %v454 = vadd.f32 %v131, %v453
    %455 = vmatprep.mubr.bf16.mxu0 0
    %456 = vmatmul.mubr.bf16.gmra.mrb[0].mxu0 %v278
    %v457 = vpop.f32.mrb[0].mxu0
    %v458 = vadd.f32 %v127, %v457
    %v459 = vpop.f32.mrb[0].mxu0
    %v460 = vadd.f32 %v131, %v459
    %v461 = vpop.f32.mrb[0].mxu0
    %v462 = vadd.f32 %v127, %v461
    %v463 = vpop.f32.mrb[0].mxu0
    %v464 = vadd.f32 %v131, %v463
    %465 = vmatprep.mubr.bf16.mxu0 0
    %466 = vmatmul.mubr.bf16.gmra.mrb[0].mxu0 %v281
    %v467 = vpop.f32.mrb[0].mxu0
    %v468 = vadd.f32 %v127, %v467
    %v469 = vpop.f32.mrb[0].mxu0
    %v470 = vadd.f32 %v131, %v469
    %v471 = vpop.f32.mrb[0].mxu0
    %v472 = vadd.f32 %v127, %v471
    %v473 = vpop.f32.mrb[0].mxu0
    %v474 = vadd.f32 %v131, %v473
    %475 = vdwg.mxu0
    %v476 = vmul.f32 %v318, 0.5
    %v477 = vmul.f32 %v320, 0.5
    %v478 = vmul.f32 %v322, 0.5
    %v479 = vmul.f32 %v324, 0.5
    %v480 = vmul.f32 %v328, 0.5
    %v481 = vmul.f32 %v330, 0.5
    %v482 = vmul.f32 %v332, 0.5
    %v483 = vmul.f32 %v334, 0.5
    %v484 = vmul.f32 %v338, 0.5
    %v485 = vmul.f32 %v340, 0.5
    %v486 = vmul.f32 %v342, 0.5
    %v487 = vmul.f32 %v344, 0.5
    %v488 = vmul.f32 %v348, 0.5
    %v489 = vmul.f32 %v350, 0.5
    %v490 = vmul.f32 %v352, 0.5
    %v491 = vmul.f32 %v354, 0.5
    %v492 = vmul.f32 %v358, 0.5
    %v493 = vmul.f32 %v360, 0.5
    %v494 = vmul.f32 %v362, 0.5
    %v495 = vmul.f32 %v364, 0.5
    %v496 = vmul.f32 %v368, 0.5
    %v497 = vmul.f32 %v370, 0.5
    %v498 = vmul.f32 %v372, 0.5
    %v499 = vmul.f32 %v374, 0.5
    %v500 = vmul.f32 %v378, 0.5
    %v501 = vmul.f32 %v380, 0.5
    %v502 = vmul.f32 %v382, 0.5
    %v503 = vmul.f32 %v384, 0.5
    %v504 = vmul.f32 %v388, 0.5
    %v505 = vmul.f32 %v390, 0.5
    %v506 = vmul.f32 %v392, 0.5
    %v507 = vmul.f32 %v394, 0.5
    %v508 = vmul.f32 %v398, 0.5
    %v509 = vmul.f32 %v400, 0.5
    %v510 = vmul.f32 %v402, 0.5
    %v511 = vmul.f32 %v404, 0.5
    %v512 = vmul.f32 %v408, 0.5
    %v513 = vmul.f32 %v410, 0.5
    %v514 = vmul.f32 %v412, 0.5
    %v515 = vmul.f32 %v414, 0.5
    %v516 = vmul.f32 %v418, 0.5
    %v517 = vmul.f32 %v420, 0.5
    %v518 = vmul.f32 %v422, 0.5
    %v519 = vmul.f32 %v424, 0.5
    %v520 = vmul.f32 %v428, 0.5
    %v521 = vmul.f32 %v430, 0.5
    %v522 = vmul.f32 %v432, 0.5
    %v523 = vmul.f32 %v434, 0.5
    %v524 = vmul.f32 %v438, 0.5
    %v525 = vmul.f32 %v440, 0.5
    %v526 = vmul.f32 %v442, 0.5
    %v527 = vmul.f32 %v444, 0.5
    %v528 = vmul.f32 %v448, 0.5
    %v529 = vmul.f32 %v450, 0.5
    %v530 = vmul.f32 %v452, 0.5
    %v531 = vmul.f32 %v454, 0.5
    %v532 = vmul.f32 %v458, 0.5
    %v533 = vmul.f32 %v460, 0.5
    %v534 = vmul.f32 %v462, 0.5
    %v535 = vmul.f32 %v464, 0.5
    %v536 = vmul.f32 %v468, 0.5
    %v537 = vmul.f32 %v470, 0.5
    %v538 = vmul.f32 %v472, 0.5
    %v539 = vmul.f32 %v474, 0.5
    %v540 = vmul.f32 %v318, 0.70710677
    %v541 = vmul.f32 %v320, 0.70710677
    %v542 = vmul.f32 %v322, 0.70710677
    %v543 = vmul.f32 %v324, 0.70710677
    %v544 = vmul.f32 %v328, 0.70710677
    %v545 = vmul.f32 %v330, 0.70710677
    %v546 = vmul.f32 %v332, 0.70710677
    %v547 = vmul.f32 %v334, 0.70710677
    %v548 = vmul.f32 %v338, 0.70710677
    %v549 = vmul.f32 %v340, 0.70710677
    %v550 = vmul.f32 %v342, 0.70710677
    %v551 = vmul.f32 %v344, 0.70710677
    %v552 = vmul.f32 %v348, 0.70710677
    %v553 = vmul.f32 %v350, 0.70710677
    %v554 = vmul.f32 %v352, 0.70710677
    %v555 = vmul.f32 %v354, 0.70710677
    %v556 = vmul.f32 %v358, 0.70710677
    %v557 = vmul.f32 %v360, 0.70710677
    %v558 = vmul.f32 %v362, 0.70710677
    %v559 = vmul.f32 %v364, 0.70710677
    %v560 = vmul.f32 %v368, 0.70710677
    %v561 = vmul.f32 %v370, 0.70710677
    %v562 = vmul.f32 %v372, 0.70710677
    %v563 = vmul.f32 %v374, 0.70710677
    %v564 = vmul.f32 %v378, 0.70710677
    %v565 = vmul.f32 %v380, 0.70710677
    %v566 = vmul.f32 %v382, 0.70710677
    %v567 = vmul.f32 %v384, 0.70710677
    %v568 = vmul.f32 %v388, 0.70710677
    %v569 = vmul.f32 %v390, 0.70710677
    %v570 = vmul.f32 %v392, 0.70710677
    %v571 = vmul.f32 %v394, 0.70710677
    %v572 = vmul.f32 %v398, 0.70710677
    %v573 = vmul.f32 %v400, 0.70710677
    %v574 = vmul.f32 %v402, 0.70710677
    %v575 = vmul.f32 %v404, 0.70710677
    %v576 = vmul.f32 %v408, 0.70710677
    %v577 = vmul.f32 %v410, 0.70710677
    %v578 = vmul.f32 %v412, 0.70710677
    %v579 = vmul.f32 %v414, 0.70710677
    %v580 = vmul.f32 %v418, 0.70710677
    %v581 = vmul.f32 %v420, 0.70710677
    %v582 = vmul.f32 %v422, 0.70710677
    %v583 = vmul.f32 %v424, 0.70710677
    %v584 = vmul.f32 %v428, 0.70710677
    %v585 = vmul.f32 %v430, 0.70710677
    %v586 = vmul.f32 %v432, 0.70710677
    %v587 = vmul.f32 %v434, 0.70710677
    %v588 = vmul.f32 %v438, 0.70710677
    %v589 = vmul.f32 %v440, 0.70710677
    %v590 = vmul.f32 %v442, 0.70710677
    %v591 = vmul.f32 %v444, 0.70710677
    %v592 = vmul.f32 %v448, 0.70710677
    %v593 = vmul.f32 %v450, 0.70710677
    %v594 = vmul.f32 %v452, 0.70710677
    %v595 = vmul.f32 %v454, 0.70710677
    %v596 = vmul.f32 %v458, 0.70710677
    %v597 = vmul.f32 %v460, 0.70710677
    %v598 = vmul.f32 %v462, 0.70710677
    %v599 = vmul.f32 %v464, 0.70710677
    %v600 = vmul.f32 %v468, 0.70710677
    %v601 = vmul.f32 %v470, 0.70710677
    %v602 = vmul.f32 %v472, 0.70710677
    %v603 = vmul.f32 %v474, 0.70710677
    %v604 = verf.f32.pop %v540
    %v605 = verf.f32.pop %v541
    %v606 = verf.f32.pop %v542
    %v607 = verf.f32.pop %v543
    %v608 = verf.f32.pop %v544
    %v609 = verf.f32.pop %v545
    %v610 = verf.f32.pop %v546
    %v611 = verf.f32.pop %v547
    %v612 = verf.f32.pop %v548
    %v613 = verf.f32.pop %v549
    %v614 = verf.f32.pop %v550
    %v615 = verf.f32.pop %v551
    %v616 = verf.f32.pop %v552
    %v617 = verf.f32.pop %v553
    %v618 = verf.f32.pop %v554
    %v619 = verf.f32.pop %v555
    %v620 = verf.f32.pop %v556
    %v621 = verf.f32.pop %v557
    %v622 = verf.f32.pop %v558
    %v623 = verf.f32.pop %v559
    %v624 = verf.f32.pop %v560
    %v625 = verf.f32.pop %v561
    %v626 = verf.f32.pop %v562
    %v627 = verf.f32.pop %v563
    %v628 = verf.f32.pop %v564
    %v629 = verf.f32.pop %v565
    %v630 = verf.f32.pop %v566
    %v631 = verf.f32.pop %v567
    %v632 = verf.f32.pop %v568
    %v633 = verf.f32.pop %v569
    %v634 = verf.f32.pop %v570
    %v635 = verf.f32.pop %v571
    %v636 = verf.f32.pop %v572
    %v637 = verf.f32.pop %v573
    %v638 = verf.f32.pop %v574
    %v639 = verf.f32.pop %v575
    %v640 = verf.f32.pop %v576
    %v641 = verf.f32.pop %v577
    %v642 = verf.f32.pop %v578
    %v643 = verf.f32.pop %v579
    %v644 = verf.f32.pop %v580
    %v645 = verf.f32.pop %v581
    %v646 = verf.f32.pop %v582
    %v647 = verf.f32.pop %v583
    %v648 = verf.f32.pop %v584
    %v649 = verf.f32.pop %v585
    %v650 = verf.f32.pop %v586
    %v651 = verf.f32.pop %v587
    %v652 = verf.f32.pop %v588
    %v653 = verf.f32.pop %v589
    %v654 = verf.f32.pop %v590
    %v655 = verf.f32.pop %v591
    %v656 = verf.f32.pop %v592
    %v657 = verf.f32.pop %v593
    %v658 = verf.f32.pop %v594
    %v659 = verf.f32.pop %v595
    %v660 = verf.f32.pop %v596
    %v661 = verf.f32.pop %v597
    %v662 = verf.f32.pop %v598
    %v663 = verf.f32.pop %v599
    %v664 = verf.f32.pop %v600
    %v665 = verf.f32.pop %v601
    %v666 = verf.f32.pop %v602
    %v667 = verf.f32.pop %v603
    %v668 = vadd.f32 %v604, 1.0
    %v669 = vadd.f32 %v605, 1.0
    %v670 = vadd.f32 %v606, 1.0
    %v671 = vadd.f32 %v607, 1.0
    %v672 = vadd.f32 %v608, 1.0
    %v673 = vadd.f32 %v609, 1.0
    %v674 = vadd.f32 %v610, 1.0
    %v675 = vadd.f32 %v611, 1.0
    %v676 = vadd.f32 %v612, 1.0
    %v677 = vadd.f32 %v613, 1.0
    %v678 = vadd.f32 %v614, 1.0
    %v679 = vadd.f32 %v615, 1.0
    %v680 = vadd.f32 %v616, 1.0
    %v681 = vadd.f32 %v617, 1.0
    %v682 = vadd.f32 %v618, 1.0
    %v683 = vadd.f32 %v619, 1.0
    %v684 = vadd.f32 %v620, 1.0
    %v685 = vadd.f32 %v621, 1.0
    %v686 = vadd.f32 %v622, 1.0
    %v687 = vadd.f32 %v623, 1.0
    %v688 = vadd.f32 %v624, 1.0
    %v689 = vadd.f32 %v625, 1.0
    %v690 = vadd.f32 %v626, 1.0
    %v691 = vadd.f32 %v627, 1.0
    %v692 = vadd.f32 %v628, 1.0
    %v693 = vadd.f32 %v629, 1.0
    %v694 = vadd.f32 %v630, 1.0
    %v695 = vadd.f32 %v631, 1.0
    %v696 = vadd.f32 %v632, 1.0
    %v697 = vadd.f32 %v633, 1.0
    %v698 = vadd.f32 %v634, 1.0
    %v699 = vadd.f32 %v635, 1.0
    %v700 = vadd.f32 %v636, 1.0
    %v701 = vadd.f32 %v637, 1.0
    %v702 = vadd.f32 %v638, 1.0
    %v703 = vadd.f32 %v639, 1.0
    %v704 = vadd.f32 %v640, 1.0
    %v705 = vadd.f32 %v641, 1.0
    %v706 = vadd.f32 %v642, 1.0
    %v707 = vadd.f32 %v643, 1.0
    %v708 = vadd.f32 %v644, 1.0
    %v709 = vadd.f32 %v645, 1.0
    %v710 = vadd.f32 %v646, 1.0
    %v711 = vadd.f32 %v647, 1.0
    %v712 = vadd.f32 %v648, 1.0
    %v713 = vadd.f32 %v649, 1.0
    %v714 = vadd.f32 %v650, 1.0
    %v715 = vadd.f32 %v651, 1.0
    %v716 = vadd.f32 %v652, 1.0
    %v717 = vadd.f32 %v653, 1.0
    %v718 = vadd.f32 %v654, 1.0
    %v719 = vadd.f32 %v655, 1.0
    %v720 = vadd.f32 %v656, 1.0
    %v721 = vadd.f32 %v657, 1.0
    %v722 = vadd.f32 %v658, 1.0
    %v723 = vadd.f32 %v659, 1.0
    %v724 = vadd.f32 %v660, 1.0
    %v725 = vadd.f32 %v661, 1.0
    %v726 = vadd.f32 %v662, 1.0
    %v727 = vadd.f32 %v663, 1.0
    %v728 = vadd.f32 %v664, 1.0
    %v729 = vadd.f32 %v665, 1.0
    %v730 = vadd.f32 %v666, 1.0
    %v731 = vadd.f32 %v667, 1.0
    %v732 = vmul.f32 %v476, %v668
    %v733 = vmul.f32 %v477, %v669
    %v734 = vmul.f32 %v478, %v670
    %v735 = vmul.f32 %v479, %v671
    %v736 = vmul.f32 %v480, %v672
    %v737 = vmul.f32 %v481, %v673
    %v738 = vmul.f32 %v482, %v674
    %v739 = vmul.f32 %v483, %v675
    %v740 = vmul.f32 %v484, %v676
    %v741 = vmul.f32 %v485, %v677
    %v742 = vmul.f32 %v486, %v678
    %v743 = vmul.f32 %v487, %v679
    %v744 = vmul.f32 %v488, %v680
    %v745 = vmul.f32 %v489, %v681
    %v746 = vmul.f32 %v490, %v682
    %v747 = vmul.f32 %v491, %v683
    %v748 = vmul.f32 %v492, %v684
    %v749 = vmul.f32 %v493, %v685
    %v750 = vmul.f32 %v494, %v686
    %v751 = vmul.f32 %v495, %v687
    %v752 = vmul.f32 %v496, %v688
    %v753 = vmul.f32 %v497, %v689
    %v754 = vmul.f32 %v498, %v690
    %v755 = vmul.f32 %v499, %v691
    %v756 = vmul.f32 %v500, %v692
    %v757 = vmul.f32 %v501, %v693
    %v758 = vmul.f32 %v502, %v694
    %v759 = vmul.f32 %v503, %v695
    %v760 = vmul.f32 %v504, %v696
    %v761 = vmul.f32 %v505, %v697
    %v762 = vmul.f32 %v506, %v698
    %v763 = vmul.f32 %v507, %v699
    %v764 = vmul.f32 %v508, %v700
    %v765 = vmul.f32 %v509, %v701
    %v766 = vmul.f32 %v510, %v702
    %v767 = vmul.f32 %v511, %v703
    %v768 = vmul.f32 %v512, %v704
    %v769 = vmul.f32 %v513, %v705
    %v770 = vmul.f32 %v514, %v706
    %v771 = vmul.f32 %v515, %v707
    %v772 = vmul.f32 %v516, %v708
    %v773 = vmul.f32 %v517, %v709
    %v774 = vmul.f32 %v518, %v710
    %v775 = vmul.f32 %v519, %v711
    %v776 = vmul.f32 %v520, %v712
    %v777 = vmul.f32 %v521, %v713
    %v778 = vmul.f32 %v522, %v714
    %v779 = vmul.f32 %v523, %v715
    %v780 = vmul.f32 %v524, %v716
    %v781 = vmul.f32 %v525, %v717
    %v782 = vmul.f32 %v526, %v718
    %v783 = vmul.f32 %v527, %v719
    %v784 = vmul.f32 %v528, %v720
    %v785 = vmul.f32 %v529, %v721
    %v786 = vmul.f32 %v530, %v722
    %v787 = vmul.f32 %v531, %v723
    %v788 = vmul.f32 %v532, %v724
    %v789 = vmul.f32 %v533, %v725
    %v790 = vmul.f32 %v534, %v726
    %v791 = vmul.f32 %v535, %v727
    %v792 = vmul.f32 %v536, %v728
    %v793 = vmul.f32 %v537, %v729
    %v794 = vmul.f32 %v538, %v730
    %v795 = vmul.f32 %v539, %v731
    %v796 = vpack.c.bf16 %v734, %v732
    %v797 = vpack.c.bf16 %v735, %v733
    %v798 = vpack.c.bf16 %v738, %v736
    %v799 = vpack.c.bf16 %v739, %v737
    %v800 = vpack.c.bf16 %v742, %v740
    %v801 = vpack.c.bf16 %v743, %v741
    %v802 = vpack.c.bf16 %v746, %v744
    %v803 = vpack.c.bf16 %v747, %v745
    %v804 = vpack.c.bf16 %v750, %v748
    %v805 = vpack.c.bf16 %v751, %v749
    %v806 = vpack.c.bf16 %v754, %v752
    %v807 = vpack.c.bf16 %v755, %v753
    %v808 = vpack.c.bf16 %v758, %v756
    %v809 = vpack.c.bf16 %v759, %v757
    %v810 = vpack.c.bf16 %v762, %v760
    %v811 = vpack.c.bf16 %v763, %v761
    %v812 = vpack.c.bf16 %v766, %v764
    %v813 = vpack.c.bf16 %v767, %v765
    %v814 = vpack.c.bf16 %v770, %v768
    %v815 = vpack.c.bf16 %v771, %v769
    %v816 = vpack.c.bf16 %v774, %v772
    %v817 = vpack.c.bf16 %v775, %v773
    %v818 = vpack.c.bf16 %v778, %v776
    %v819 = vpack.c.bf16 %v779, %v777
    %v820 = vpack.c.bf16 %v782, %v780
    %v821 = vpack.c.bf16 %v783, %v781
    %v822 = vpack.c.bf16 %v786, %v784
    %v823 = vpack.c.bf16 %v787, %v785
    %v824 = vpack.c.bf16 %v790, %v788
    %v825 = vpack.c.bf16 %v791, %v789
    %v826 = vpack.c.bf16 %v794, %v792
    %v827 = vpack.c.bf16 %v795, %v793
    %v828 = vld [vmem:[#allocation8] sm:$0xf]
    %v829 = vld [vmem:[#allocation8 + $0x4] sm:$0xf]
    %v830 = vld [vmem:[#allocation8 + $0x8] sm:$0xf]
    %v831 = vld [vmem:[#allocation8 + $0xc] sm:$0xf]
    %v832 = vld [vmem:[#allocation8 + $0x10] sm:$0xf]
    %v833 = vld [vmem:[#allocation8 + $0x14] sm:$0xf]
    %v834 = vld [vmem:[#allocation8 + $0x18] sm:$0xf]
    %v835 = vld [vmem:[#allocation8 + $0x1c] sm:$0xf]
    %v836 = vld [vmem:[#allocation8 + $0x20] sm:$0xf]
    %v837 = vld [vmem:[#allocation8 + $0x24] sm:$0xf]
    %v838 = vld [vmem:[#allocation8 + $0x28] sm:$0xf]
    %v839 = vld [vmem:[#allocation8 + $0x2c] sm:$0xf]
    %v840 = vld [vmem:[#allocation8 + $0x30] sm:$0xf]
    %v841 = vld [vmem:[#allocation8 + $0x34] sm:$0xf]
    %v842 = vld [vmem:[#allocation8 + $0x38] sm:$0xf]
    %v843 = vld [vmem:[#allocation8 + $0x3c] sm:$0xf]
    %v844 = vld [vmem:[#allocation8 + $0x40] sm:$0xf]
    %v845 = vld [vmem:[#allocation8 + $0x44] sm:$0xf]
    %v846 = vld [vmem:[#allocation8 + $0x48] sm:$0xf]
    %v847 = vld [vmem:[#allocation8 + $0x4c] sm:$0xf]
    %v848 = vld [vmem:[#allocation8 + $0x50] sm:$0xf]
    %v849 = vld [vmem:[#allocation8 + $0x54] sm:$0xf]
    %v850 = vld [vmem:[#allocation8 + $0x58] sm:$0xf]
    %v851 = vld [vmem:[#allocation8 + $0x5c] sm:$0xf]
    %v852 = vld [vmem:[#allocation8 + $0x60] sm:$0xf]
    %v853 = vld [vmem:[#allocation8 + $0x64] sm:$0xf]
    %v854 = vld [vmem:[#allocation8 + $0x68] sm:$0xf]
    %v855 = vld [vmem:[#allocation8 + $0x6c] sm:$0xf]
    %v856 = vld [vmem:[#allocation8 + $0x70] sm:$0xf]
    %v857 = vld [vmem:[#allocation8 + $0x74] sm:$0xf]
    %v858 = vld [vmem:[#allocation8 + $0x78] sm:$0xf]
    %v859 = vld [vmem:[#allocation8 + $0x7c] sm:$0xf]
    %v860 = vld [vmem:[#allocation10] sm:$0x1]
    %v862 = vlaneseq
    %v863 = vshrl.u32 %v862, 7
    %v864 = vsub.s32 0, %v863
    %v865 = vrot.slane %v860, %v864
    %v899 = vunpack.c.l.b16 %v828
    %v900 = vunpack.c.l.b16 %v829
    %v901 = vunpack.c.l.b16 %v830
    %v902 = vunpack.c.l.b16 %v831
    %v903 = vunpack.c.l.b16 %v832
    %v904 = vunpack.c.l.b16 %v833
    %v905 = vunpack.c.l.b16 %v834
    %v906 = vunpack.c.l.b16 %v835
    %v907 = vunpack.c.l.b16 %v836
    %v908 = vunpack.c.l.b16 %v837
    %v909 = vunpack.c.l.b16 %v838
    %v910 = vunpack.c.l.b16 %v839
    %v911 = vunpack.c.l.b16 %v840
    %v912 = vunpack.c.l.b16 %v841
    %v913 = vunpack.c.l.b16 %v842
    %v914 = vunpack.c.l.b16 %v843
    %v915 = vunpack.c.l.b16 %v844
    %v916 = vunpack.c.l.b16 %v845
    %v917 = vunpack.c.l.b16 %v846
    %v918 = vunpack.c.l.b16 %v847
    %v919 = vunpack.c.l.b16 %v848
    %v920 = vunpack.c.l.b16 %v849
    %v921 = vunpack.c.l.b16 %v850
    %v922 = vunpack.c.l.b16 %v851
    %v923 = vunpack.c.l.b16 %v852
    %v924 = vunpack.c.l.b16 %v853
    %v925 = vunpack.c.l.b16 %v854
    %v926 = vunpack.c.l.b16 %v855
    %v927 = vunpack.c.l.b16 %v856
    %v928 = vunpack.c.l.b16 %v857
    %v929 = vunpack.c.l.b16 %v858
    %v930 = vunpack.c.l.b16 %v859
    %v931 = vpack.c.b16 %v900, %v899
    %v932 = vpack.c.b16 %v902, %v901
    %v933 = vpack.c.b16 %v904, %v903
    %v934 = vpack.c.b16 %v906, %v905
    %v935 = vpack.c.b16 %v908, %v907
    %v936 = vpack.c.b16 %v910, %v909
    %v937 = vpack.c.b16 %v912, %v911
    %v938 = vpack.c.b16 %v914, %v913
    %v939 = vpack.c.b16 %v916, %v915
    %v940 = vpack.c.b16 %v918, %v917
    %v941 = vpack.c.b16 %v920, %v919
    %v942 = vpack.c.b16 %v922, %v921
    %v943 = vpack.c.b16 %v924, %v923
    %v944 = vpack.c.b16 %v926, %v925
    %v945 = vpack.c.b16 %v928, %v927
    %v946 = vpack.c.b16 %v930, %v929
    %963 = vmatprep.subr.bf16.mxu0 0
    %964 = vmatpush1.bf16.msra.mxu0 %v931
    %965 = vmatprep.subr.bf16.mxu0 0
    %966 = vmatpush1.bf16.msra.mxu0 %v932
    %967 = vmatprep.subr.bf16.mxu0 0
    %968 = vmatpush1.bf16.msra.mxu0 %v933
    %969 = vmatprep.subr.bf16.mxu0 0
    %970 = vmatpush1.bf16.msra.mxu0 %v934
    %971 = vmatprep.subr.bf16.mxu0 0
    %972 = vmatpush1.bf16.msra.mxu0 %v935
    %973 = vmatprep.subr.bf16.mxu0 0
    %974 = vmatpush1.bf16.msra.mxu0 %v936
    %975 = vmatprep.subr.bf16.mxu0 0
    %976 = vmatpush1.bf16.msra.mxu0 %v937
    %977 = vmatprep.subr.bf16.mxu0 0
    %978 = vmatpush1.bf16.msra.mxu0 %v938
    %979 = vmatprep.subr.bf16.mxu0 0
    %980 = vmatpush1.bf16.msra.mxu0 %v939
    %981 = vmatprep.subr.bf16.mxu0 0
    %982 = vmatpush1.bf16.msra.mxu0 %v940
    %983 = vmatprep.subr.bf16.mxu0 0
    %984 = vmatpush1.bf16.msra.mxu0 %v941
    %985 = vmatprep.subr.bf16.mxu0 0
    %986 = vmatpush1.bf16.msra.mxu0 %v942
    %987 = vmatprep.subr.bf16.mxu0 0
    %988 = vmatpush1.bf16.msra.mxu0 %v943
    %989 = vmatprep.subr.bf16.mxu0 0
    %990 = vmatpush1.bf16.msra.mxu0 %v944
    %991 = vmatprep.subr.bf16.mxu0 0
    %992 = vmatpush1.bf16.msra.mxu0 %v945
    %993 = vmatprep.subr.bf16.mxu0 0
    %994 = vmatpush1.bf16.msra.mxu0 %v946
    %995 = vmatprep.mubr.bf16.mxu0 %v797
    %996 = vmatmul.mubr.bf16.gmra.mrb[0].mxu0 %v796
    %v997 = vpop.f32.mrb[0].mxu0
    %v998 = vadd.f32 %v865, %v997
    %v999 = vpop.f32.mrb[0].mxu0
    %v1000 = vpop.f32.mrb[0].mxu0
    %v1001 = vadd.f32 %v865, %v1000
    %v1002 = vpop.f32.mrb[0].mxu0
    %1003 = vmatprep.mubr.bf16.mxu0 %v799
    %1004 = vmatmul.mubr.bf16.gmra.mrb[0].mxu0 %v798
    %v1005 = vpop.f32.mrb[0].mxu0
    %v1006 = vadd.f32 %v865, %v1005
    %v1007 = vpop.f32.mrb[0].mxu0
    %v1008 = vpop.f32.mrb[0].mxu0
    %v1009 = vadd.f32 %v865, %v1008
    %v1010 = vpop.f32.mrb[0].mxu0
    %1011 = vmatprep.mubr.bf16.mxu0 %v801
    %1012 = vmatmul.mubr.bf16.gmra.mrb[0].mxu0 %v800
    %v1013 = vpop.f32.mrb[0].mxu0
    %v1014 = vadd.f32 %v865, %v1013
    %v1015 = vpop.f32.mrb[0].mxu0
    %v1016 = vpop.f32.mrb[0].mxu0
    %v1017 = vadd.f32 %v865, %v1016
    %v1018 = vpop.f32.mrb[0].mxu0
    %1019 = vmatprep.mubr.bf16.mxu0 %v803
    %1020 = vmatmul.mubr.bf16.gmra.mrb[0].mxu0 %v802
    %v1021 = vpop.f32.mrb[0].mxu0
    %v1022 = vadd.f32 %v865, %v1021
    %v1023 = vpop.f32.mrb[0].mxu0
    %v1024 = vpop.f32.mrb[0].mxu0
    %v1025 = vadd.f32 %v865, %v1024
    %v1026 = vpop.f32.mrb[0].mxu0
    %1027 = vmatprep.mubr.bf16.mxu0 %v805
    %1028 = vmatmul.mubr.bf16.gmra.mrb[0].mxu0 %v804
    %v1029 = vpop.f32.mrb[0].mxu0
    %v1030 = vadd.f32 %v865, %v1029
    %v1031 = vpop.f32.mrb[0].mxu0
    %v1032 = vpop.f32.mrb[0].mxu0
    %v1033 = vadd.f32 %v865, %v1032
    %v1034 = vpop.f32.mrb[0].mxu0
    %1035 = vmatprep.mubr.bf16.mxu0 %v807
    %1036 = vmatmul.mubr.bf16.gmra.mrb[0].mxu0 %v806
    %v1037 = vpop.f32.mrb[0].mxu0
    %v1038 = vadd.f32 %v865, %v1037
    %v1039 = vpop.f32.mrb[0].mxu0
    %v1040 = vpop.f32.mrb[0].mxu0
    %v1041 = vadd.f32 %v865, %v1040
    %v1042 = vpop.f32.mrb[0].mxu0
    %1043 = vmatprep.mubr.bf16.mxu0 %v809
    %1044 = vmatmul.mubr.bf16.gmra.mrb[0].mxu0 %v808
    %v1045 = vpop.f32.mrb[0].mxu0
    %v1046 = vadd.f32 %v865, %v1045
    %v1047 = vpop.f32.mrb[0].mxu0
    %v1048 = vpop.f32.mrb[0].mxu0
    %v1049 = vadd.f32 %v865, %v1048
    %v1050 = vpop.f32.mrb[0].mxu0
    %1051 = vmatprep.mubr.bf16.mxu0 %v811
    %1052 = vmatmul.mubr.bf16.gmra.mrb[0].mxu0 %v810
    %v1053 = vpop.f32.mrb[0].mxu0
    %v1054 = vadd.f32 %v865, %v1053
    %v1055 = vpop.f32.mrb[0].mxu0
    %v1056 = vpop.f32.mrb[0].mxu0
    %v1057 = vadd.f32 %v865, %v1056
    %v1058 = vpop.f32.mrb[0].mxu0
    %1059 = vmatprep.mubr.bf16.mxu0 %v813
    %1060 = vmatmul.mubr.bf16.gmra.mrb[0].mxu0 %v812
    %v1061 = vpop.f32.mrb[0].mxu0
    %v1062 = vadd.f32 %v865, %v1061
    %v1063 = vpop.f32.mrb[0].mxu0
    %v1064 = vpop.f32.mrb[0].mxu0
    %v1065 = vadd.f32 %v865, %v1064
    %v1066 = vpop.f32.mrb[0].mxu0
    %1067 = vmatprep.mubr.bf16.mxu0 %v815
    %1068 = vmatmul.mubr.bf16.gmra.mrb[0].mxu0 %v814
    %v1069 = vpop.f32.mrb[0].mxu0
    %v1070 = vadd.f32 %v865, %v1069
    %v1071 = vpop.f32.mrb[0].mxu0
    %v1072 = vpop.f32.mrb[0].mxu0
    %v1073 = vadd.f32 %v865, %v1072
    %v1074 = vpop.f32.mrb[0].mxu0
    %1075 = vmatprep.mubr.bf16.mxu0 %v817
    %1076 = vmatmul.mubr.bf16.gmra.mrb[0].mxu0 %v816
    %v1077 = vpop.f32.mrb[0].mxu0
    %v1078 = vadd.f32 %v865, %v1077
    %v1079 = vpop.f32.mrb[0].mxu0
    %v1080 = vpop.f32.mrb[0].mxu0
    %v1081 = vadd.f32 %v865, %v1080
    %v1082 = vpop.f32.mrb[0].mxu0
    %1083 = vmatprep.mubr.bf16.mxu0 %v819
    %1084 = vmatmul.mubr.bf16.gmra.mrb[0].mxu0 %v818
    %v1085 = vpop.f32.mrb[0].mxu0
    %v1086 = vadd.f32 %v865, %v1085
    %v1087 = vpop.f32.mrb[0].mxu0
    %v1088 = vpop.f32.mrb[0].mxu0
    %v1089 = vadd.f32 %v865, %v1088
    %v1090 = vpop.f32.mrb[0].mxu0
    %1091 = vmatprep.mubr.bf16.mxu0 %v821
    %1092 = vmatmul.mubr.bf16.gmra.mrb[0].mxu0 %v820
    %v1093 = vpop.f32.mrb[0].mxu0
    %v1094 = vadd.f32 %v865, %v1093
    %v1095 = vpop.f32.mrb[0].mxu0
    %v1096 = vpop.f32.mrb[0].mxu0
    %v1097 = vadd.f32 %v865, %v1096
    %v1098 = vpop.f32.mrb[0].mxu0
    %1099 = vmatprep.mubr.bf16.mxu0 %v823
    %1100 = vmatmul.mubr.bf16.gmra.mrb[0].mxu0 %v822
    %v1101 = vpop.f32.mrb[0].mxu0
    %v1102 = vadd.f32 %v865, %v1101
    %v1103 = vpop.f32.mrb[0].mxu0
    %v1104 = vpop.f32.mrb[0].mxu0
    %v1105 = vadd.f32 %v865, %v1104
    %v1106 = vpop.f32.mrb[0].mxu0
    %1107 = vmatprep.mubr.bf16.mxu0 %v825
    %1108 = vmatmul.mubr.bf16.gmra.mrb[0].mxu0 %v824
    %v1109 = vpop.f32.mrb[0].mxu0
    %v1110 = vadd.f32 %v865, %v1109
    %v1111 = vpop.f32.mrb[0].mxu0
    %v1112 = vpop.f32.mrb[0].mxu0
    %v1113 = vadd.f32 %v865, %v1112
    %v1114 = vpop.f32.mrb[0].mxu0
    %1115 = vmatprep.mubr.bf16.mxu0 %v827
    %1116 = vmatmul.mubr.bf16.gmra.mrb[0].mxu0 %v826
    %v1117 = vpop.f32.mrb[0].mxu0
    %v1118 = vadd.f32 %v865, %v1117
    %v1119 = vpop.f32.mrb[0].mxu0
    %v1120 = vpop.f32.mrb[0].mxu0
    %v1121 = vadd.f32 %v865, %v1120
    %v1122 = vpop.f32.mrb[0].mxu0
    %1123 = vdwg.mxu0
    %1124 = vst.msk [vmem:[#allocation11] sm:$0xff] %vm234, %v998
    %1125 = vst.msk [vmem:[#allocation11 + $0x8] sm:$0xff] %vm234, %v1001
    %1126 = vst.msk [vmem:[#allocation11 + $0x10] sm:$0xff] %vm234, %v1006
    %1127 = vst.msk [vmem:[#allocation11 + $0x18] sm:$0xff] %vm234, %v1009
    %1128 = vst.msk [vmem:[#allocation11 + $0x20] sm:$0xff] %vm234, %v1014
    %1129 = vst.msk [vmem:[#allocation11 + $0x28] sm:$0xff] %vm234, %v1017
    %1130 = vst.msk [vmem:[#allocation11 + $0x30] sm:$0xff] %vm234, %v1022
    %1131 = vst.msk [vmem:[#allocation11 + $0x38] sm:$0xff] %vm234, %v1025
    %1132 = vst.msk [vmem:[#allocation11 + $0x40] sm:$0xff] %vm234, %v1030
    %1133 = vst.msk [vmem:[#allocation11 + $0x48] sm:$0xff] %vm234, %v1033
    %1134 = vst.msk [vmem:[#allocation11 + $0x50] sm:$0xff] %vm234, %v1038
    %1135 = vst.msk [vmem:[#allocation11 + $0x58] sm:$0xff] %vm234, %v1041
    %1136 = vst.msk [vmem:[#allocation11 + $0x60] sm:$0xff] %vm234, %v1046
    %1137 = vst.msk [vmem:[#allocation11 + $0x68] sm:$0xff] %vm234, %v1049
    %1138 = vst.msk [vmem:[#allocation11 + $0x70] sm:$0xff] %vm234, %v1054
    %1139 = vst.msk [vmem:[#allocation11 + $0x78] sm:$0xff] %vm234, %v1057
    %1140 = vst.msk [vmem:[#allocation11 + $0x80] sm:$0xff] %vm234, %v1062
    %1141 = vst.msk [vmem:[#allocation11 + $0x88] sm:$0xff] %vm234, %v1065
    %1142 = vst.msk [vmem:[#allocation11 + $0x90] sm:$0xff] %vm234, %v1070
    %1143 = vst.msk [vmem:[#allocation11 + $0x98] sm:$0xff] %vm234, %v1073
    %1144 = vst.msk [vmem:[#allocation11 + $0xa0] sm:$0xff] %vm234, %v1078
    %1145 = vst.msk [vmem:[#allocation11 + $0xa8] sm:$0xff] %vm234, %v1081
    %1146 = vst.msk [vmem:[#allocation11 + $0xb0] sm:$0xff] %vm234, %v1086
    %1147 = vst.msk [vmem:[#allocation11 + $0xb8] sm:$0xff] %vm234, %v1089
    %1148 = vst.msk [vmem:[#allocation11 + $0xc0] sm:$0xff] %vm234, %v1094
    %1149 = vst.msk [vmem:[#allocation11 + $0xc8] sm:$0xff] %vm234, %v1097
    %1150 = vst.msk [vmem:[#allocation11 + $0xd0] sm:$0xff] %vm234, %v1102
    %1151 = vst.msk [vmem:[#allocation11 + $0xd8] sm:$0xff] %vm234, %v1105
    %1152 = vst.msk [vmem:[#allocation11 + $0xe0] sm:$0xff] %vm234, %v1110
    %1153 = vst.msk [vmem:[#allocation11 + $0xe8] sm:$0xff] %vm234, %v1113
    %1154 = vst.msk [vmem:[#allocation11 + $0xf0] sm:$0xff] %vm234, %v1118
    %1155 = vst.msk [vmem:[#allocation11 + $0xf8] sm:$0xff] %vm234, %v1121
    // Predicated region
    $region42: #{tpu_custom_call.1} parent=1 // pred_check
      _
    $region43: #{tpu_custom_call.1} parent=1 // pred_check_branch
      %1157 = sbr.rel (0) target = $region45
    $region44: #{tpu_custom_call.1} parent=1 // pred_region
      %s1159 = ssub.s32 4096, 4096
      %1160 = vsyncadd [#allocation4], %s1159
      %s1161 = sshll.u32 [#allocation11], 4
      %s1162 = int_to_ptr.vmem [resolvable:$true] %s1161
      %1167 = dma.vmem_to_hbm [thread:$0]  %s1162, 4096, %s5, [#allocation4], 128, 128, 8
    $region45: #{tpu_custom_call.1} parent=1 // pred_fallthru
      _
    // Predicated region
    $region46: #{tpu_custom_call.1} parent=1 // pred_check
      _
    $region47: #{tpu_custom_call.1} parent=1 // pred_check_branch
      %1169 = sbr.rel (0) target = $region49
    $region48: #{tpu_custom_call.1} parent=1 // pred_region
      %1170 = dma.done [#allocation4], 4096
    $region49: #{tpu_custom_call.1} parent=1 // pred_fallthru
      _
    %1171 = vsyncpa [#allocation3], 1
    %1172 = vsyncpa [#allocation6], 1
    %1173 = vsyncpa [#allocation9], 1
    %1174 = vsyncpa [#allocation4], 1

</llo_original>
